<compile_context>
chip_gen: v7x
topology: tpu7x:2x2x1
jax: 0.10.0
libtpu: 0.0.40
codegen_flags: <defaults>
</compile_context>

<pallas_src>
import math
import numpy as np
import jax
import jax.numpy as jnp
from jax import lax
from jax.experimental import pallas as pl
from jax.experimental.pallas import tpu as pltpu


# ---------------------------------------------------------------------------
# Kernel
# ---------------------------------------------------------------------------
def s4d_kernel(rot_ref, base_ref, k_ref):
    """One (H-tile, L-tile) block of the S4D kernel generation.

    rot_ref:  (2*N2, TH, 1)   -- Re/Im of exp(dtA * j*TL), interleaved per mode
    base_ref: (2*N2, TH, TL)  -- Re/Im of 2*C'*exp(dtA*t), t in [0, TL)
    k_ref:    (TH, TL) output tile
    """
    n_modes = base_ref.shape[0] // 2
    th, tl = k_ref.shape

    # Lane-chunk the tile so the accumulator stays resident in vregs
    # (<= ~32 vregs of f32) -> the 4-wide VALU, not vld/vst, is the binding slot.
    chunk = tl
    if th * chunk > 32 * 1024:
        chunk = 128
        while (chunk * 2 <= tl and tl % (chunk * 2) == 0
               and th * (chunk * 2) <= 32 * 1024):
            chunk *= 2
    n_chunks = tl // chunk

    for c in range(n_chunks):                       # static, small
        off = c * chunk

        def term(n_re, n_im):
            rr = rot_ref[n_re]                       # (TH, 1)
            ri = rot_ref[n_im]                       # (TH, 1)
            br = base_ref[n_re, :, pl.ds(off, chunk)]    # (TH, chunk)
            bi = base_ref[n_im, :, pl.ds(off, chunk)]
            # Re( rot * base ): pure VALU multiply-adds over the dense tile.
            return rr * br - ri * bi

        if n_modes <= 8:
            # Small mode count: full static unroll keeps all 4 VALU slots busy.
            acc = term(0, 1)
            for n in range(1, n_modes):
                acc = acc + term(2 * n, 2 * n + 1)
        else:
            # Production mode counts: modest unroll, dynamic leading-axis slice.
            def body(n, acc):
                return acc + term(2 * n, 2 * n + 1)
            acc = lax.fori_loop(0, n_modes, body,
                                jnp.zeros((th, chunk), jnp.float32),
                                unroll=8)

        k_ref[:, pl.ds(off, chunk)] = acc


# ---------------------------------------------------------------------------
# Tile selection (generation-aware VMEM budgeting)
# ---------------------------------------------------------------------------
def _choose_tiles(H, N2, L):
    bytes_per = 4
    budget = 20 << 20   # per-step block working set; well under v7x scoped VMEM

    def blocks_bytes(th_, tl_):
        base = 2 * (2 * N2) * th_ * tl_ * bytes_per   # double-buffered base tile
        rot = 2 * (2 * N2) * th_ * 128 * bytes_per    # (.., 1) lane-padded to 128
        out = 2 * th_ * tl_ * bytes_per               # double-buffered output
        return base + rot + out

    # L tile: single biggest lane-dense tile (no forced halving -- extra grid
    # steps are pure overhead on 1-TC v5e/v6e; v7x parallelism comes from H).
    tl = max(128, min(2048, pl.cdiv(L, 128) * 128))

    # H tile: multiple of 8 (or the full, possibly ragged, H).
    th = H if (H % 8 != 0) else min(H, 256)

    while blocks_bytes(th, tl) > budget and tl > 128:
        tl = max(128, ((tl // 2) // 128) * 128)
    while blocks_bytes(th, tl) > budget and H % 8 == 0 and th > 8:
        th = max(8, ((th // 2) // 8) * 8)

    # v7x megacore: ensure at least one parallel axis has >= 2 steps, sourced
    # from H so the L tile stays maximal.
    if pl.cdiv(H, th) == 1 and pl.cdiv(L, tl) == 1 and H % 16 == 0 and th >= 16:
        th = th // 2

    return th, tl, blocks_bytes(th, tl)


# ---------------------------------------------------------------------------
# Wrapper: glue (O(H*N2*TL) + O(H*N2*num_tiles) work) + pallas_call
# ---------------------------------------------------------------------------
def s4d_forward(log_dt, log_A_real, A_imag, C_ri, L):
    """Pallas-backed forward. Returns K of shape (H, L), float32."""
    H, N2 = log_A_real.shape
    if N2 == 0:
        return jnp.zeros((H, L), jnp.float32)

    th, tl, block_bytes = _choose_tiles(H, N2, L)
    gh = pl.cdiv(H, th)
    gl = pl.cdiv(L, tl)

    # --- tiny parameter preprocessing (JAX glue) ---
    dt = jnp.exp(log_dt).astype(jnp.float32)                  # (H,)
    A = -jnp.exp(log_A_real) + 1j * A_imag                    # (H, N2) c64
    dtA = A * dt[:, None]                                     # (H, N2) c64
    C = C_ri[..., 0] + 1j * C_ri[..., 1]                      # (H, N2) c64
    Cmod = 2.0 * C * (jnp.exp(dtA) - 1.0) / A                 # 2x folded in

    # Tile-invariant base table: 2*C' * exp(dtA * t), t = 0..tl-1,
    # laid out (2*N2, H, tl) with Re/Im interleaved along the leading axis.
    t = jnp.arange(tl, dtype=jnp.float32)
    base_c = Cmod[:, :, None] * jnp.exp(dtA[:, :, None] * t)  # (H, N2, tl) c64
    base = jnp.stack([jnp.real(base_c), jnp.imag(base_c)], axis=2)  # (H,N2,2,tl)
    base = jnp.transpose(base, (1, 2, 0, 3)).reshape(2 * N2, H, tl)
    base = base.astype(jnp.float32)

    # Per-L-tile rotation exp(dtA * j*tl), precomputed for all tiles with a
    # mod-2pi phase reduction (no in-kernel cos/sin; t0 exact for L < 2^24).
    t0 = jnp.arange(gl, dtype=jnp.float32) * np.float32(tl)   # (gl,)
    ar = jnp.real(dtA)[None, :, :]                            # (1, H, N2)
    ai = jnp.imag(dtA)[None, :, :]
    phase = ai * t0[:, None, None]                            # (gl, H, N2)
    two_pi = np.float32(2.0 * np.pi)
    phase = phase - two_pi * jnp.round(phase / two_pi)
    mag = jnp.exp(ar * t0[:, None, None])
    rr = mag * jnp.cos(phase)
    ri = mag * jnp.sin(phase)
    rot = jnp.stack([rr, ri], axis=-1)                        # (gl, H, N2, 2)
    rot = jnp.transpose(rot, (0, 2, 3, 1)).reshape(gl, 2 * N2, H)
    rot = rot[..., None].astype(jnp.float32)                  # (gl, 2*N2, H, 1)

    # Explicit VMEM limit sized from the actual block working set (defaults:
    # 16 MiB v5e / 32 MiB v6e+v7x); capped well under v7x's 64 MiB physical.
    vmem_limit = min(max((block_bytes * 3) // 2 + (2 << 20), 32 << 20), 56 << 20)

    cost = pl.CostEstimate(
        flops=int(4 * H * L * N2),
        transcendentals=0,
        bytes_accessed=int((base.size + rot.size * gh + H * L) * 4),
    )

    return pl.pallas_call(
        s4d_kernel,
        out_shape=jax.ShapeDtypeStruct((H, L), jnp.float32),   # ragged L masked
        grid_spec=pltpu.PrefetchScalarGridSpec(
            num_scalar_prefetch=0,
            grid=(gh, gl),
            in_specs=[
                # rotation: indexed by the L tile (j) and the H tile (i)
                pl.BlockSpec((None, 2 * N2, th, 1), lambda i, j: (j, 0, i, 0)),
                # base table: indexed by the H tile only (re-used across j,
                # inner L axis -> fetched once per H tile)
                pl.BlockSpec((2 * N2, th, tl), lambda i, j: (0, i, 0)),
            ],
            out_specs=pl.BlockSpec((th, tl), lambda i, j: (i, j)),
        ),
        compiler_params=pltpu.CompilerParams(
            dimension_semantics=("parallel", "parallel"),
            vmem_limit_bytes=int(vmem_limit),
        ),
        cost_estimate=cost,
    )(rot, base)


# ---------------------------------------------------------------------------
# Pure-JAX reference mirroring the PyTorch forward exactly
# ---------------------------------------------------------------------------
def s4d_reference(log_dt, log_A_real, A_imag, C_ri, L):
    dt = jnp.exp(log_dt)
    C = C_ri[..., 0] + 1j * C_ri[..., 1]
    A = -jnp.exp(log_A_real) + 1j * A_imag
    dtA = A * dt[:, None]
    K = dtA[:, :, None] * jnp.arange(L, dtype=jnp.float32)
    Cm = C * (jnp.exp(dtA) - 1.0) / A
    return (2.0 * jnp.einsum('hn,hnl->hl', Cm, jnp.exp(K))).real


def init_params(key, d_model, N):
    """Deterministic init matching S4DKernel_simple.__init__ semantics."""
    H = d_model
    N2 = N // 2
    # log_dt = rand*(log(1e-4)-log(1e-4)) + log(1e-4)  -> constant log(1e-4)
    log_dt = jnp.full((H,), math.log(0.0001), dtype=jnp.float32)

    alpha = math.pi
    shift = 0.0
    A_imag = jnp.tile(jnp.arange(N2, dtype=jnp.float32)[None, :], (H, 1)) * alpha + shift
    A_imag = A_imag.at[:, 0].multiply(0.0)

    log_A_real = jnp.log(3.0 * jnp.ones((H, N2), dtype=jnp.float32))
    log_A_real = log_A_real.at[:, 0].set(-5.0)

    k_re, k_im = jax.random.split(key)
    C_re = jax.random.normal(k_re, (H, N2), dtype=jnp.float32)
    C_im = jax.random.normal(k_im, (H, N2), dtype=jnp.float32)
    scale = jnp.abs(A_imag) / 1000.0
    C_ri = jnp.stack([C_re * scale, C_im * scale], axis=-1)   # view_as_real (H, N2, 2)

    return log_dt, log_A_real, A_imag, C_ri


if __name__ == "__main__":
    key = jax.random.PRNGKey(0)
    d_model = 32     # H
    N = 8            # -> N2 = 4 complex modes

    log_dt, log_A_real, A_imag, C_ri = init_params(key, d_model, N)

    for L in (1024, 256):
        k_out = jax.block_until_ready(
            s4d_forward(log_dt, log_A_real, A_imag, C_ri, L))
        k_ref = jax.block_until_ready(
            s4d_reference(log_dt, log_A_real, A_imag, C_ri, L))

        assert k_out.shape == (d_model, L)
        assert k_out.dtype == jnp.float32
        np.testing.assert_allclose(np.asarray(k_out), np.asarray(k_ref),
                                   rtol=1e-3, atol=1e-6)

    print("KERNEL_OK")
</pallas_src>

<mosaic_0001>
module attributes {stable_mosaic.version = 11 : i64} {
  func.func @s4d_kernel(%arg0: i32, %arg1: i32, %arg2: memref<1x8x16x1xf32, #tpu.memory_space<vmem>>, %arg3: memref<8x16x1024xf32, #tpu.memory_space<vmem>>, %arg4: memref<16x1024xf32, #tpu.memory_space<vmem>>) attributes {dimension_semantics = [#tpu.dimension_semantics<parallel>, #tpu.dimension_semantics<parallel>], iteration_bounds = array<i64: 2, 1>, scalar_prefetch = 0 : i64, scratch_operands = 0 : i64, tpu.core_type = #tpu.core_type<tc>, window_params = [{transform_indices = @transform_0, window_bounds = array<i64: 1, 8, 16, 1>}, {transform_indices = @transform_1, window_bounds = array<i64: 8, 16, 1024>}, {transform_indices = @transform_2, window_bounds = array<i64: 16, 1024>}]} {
    %c0 = arith.constant 0 : index
    %c0_0 = arith.constant 0 : index
    %c0_1 = arith.constant 0 : index
    %c0_2 = arith.constant 0 : index
    %0 = vector.load %arg2[%c0, %c0_0, %c0_1, %c0_2] : memref<1x8x16x1xf32, #tpu.memory_space<vmem>>, vector<1x1x16x1xf32>
    %1 = vector.shape_cast %0 : vector<1x1x16x1xf32> to vector<16x1xf32>
    %c0_3 = arith.constant 0 : index
    %c1 = arith.constant 1 : index
    %c0_4 = arith.constant 0 : index
    %c0_5 = arith.constant 0 : index
    %2 = vector.load %arg2[%c0_3, %c1, %c0_4, %c0_5] : memref<1x8x16x1xf32, #tpu.memory_space<vmem>>, vector<1x1x16x1xf32>
    %3 = vector.shape_cast %2 : vector<1x1x16x1xf32> to vector<16x1xf32>
    %c0_6 = arith.constant 0 : index
    %c0_7 = arith.constant 0 : index
    %c0_8 = arith.constant 0 : index
    %4 = vector.load %arg3[%c0_6, %c0_7, %c0_8] : memref<8x16x1024xf32, #tpu.memory_space<vmem>>, vector<1x16x1024xf32>
    %5 = vector.shape_cast %4 : vector<1x16x1024xf32> to vector<16x1024xf32>
    %c1_9 = arith.constant 1 : index
    %c0_10 = arith.constant 0 : index
    %c0_11 = arith.constant 0 : index
    %6 = vector.load %arg3[%c1_9, %c0_10, %c0_11] : memref<8x16x1024xf32, #tpu.memory_space<vmem>>, vector<1x16x1024xf32>
    %7 = vector.shape_cast %6 : vector<1x16x1024xf32> to vector<16x1024xf32>
    %8 = vector.broadcast %1 : vector<16x1xf32> to vector<16x1024xf32>
    %9 = arith.mulf %8, %5 : vector<16x1024xf32>
    %10 = vector.broadcast %3 : vector<16x1xf32> to vector<16x1024xf32>
    %11 = arith.mulf %10, %7 : vector<16x1024xf32>
    %12 = arith.subf %9, %11 : vector<16x1024xf32>
    %c0_12 = arith.constant 0 : index
    %c2 = arith.constant 2 : index
    %c0_13 = arith.constant 0 : index
    %c0_14 = arith.constant 0 : index
    %13 = vector.load %arg2[%c0_12, %c2, %c0_13, %c0_14] : memref<1x8x16x1xf32, #tpu.memory_space<vmem>>, vector<1x1x16x1xf32>
    %14 = vector.shape_cast %13 : vector<1x1x16x1xf32> to vector<16x1xf32>
    %c0_15 = arith.constant 0 : index
    %c3 = arith.constant 3 : index
    %c0_16 = arith.constant 0 : index
    %c0_17 = arith.constant 0 : index
    %15 = vector.load %arg2[%c0_15, %c3, %c0_16, %c0_17] : memref<1x8x16x1xf32, #tpu.memory_space<vmem>>, vector<1x1x16x1xf32>
    %16 = vector.shape_cast %15 : vector<1x1x16x1xf32> to vector<16x1xf32>
    %c2_18 = arith.constant 2 : index
    %c0_19 = arith.constant 0 : index
    %c0_20 = arith.constant 0 : index
    %17 = vector.load %arg3[%c2_18, %c0_19, %c0_20] : memref<8x16x1024xf32, #tpu.memory_space<vmem>>, vector<1x16x1024xf32>
    %18 = vector.shape_cast %17 : vector<1x16x1024xf32> to vector<16x1024xf32>
    %c3_21 = arith.constant 3 : index
    %c0_22 = arith.constant 0 : index
    %c0_23 = arith.constant 0 : index
    %19 = vector.load %arg3[%c3_21, %c0_22, %c0_23] : memref<8x16x1024xf32, #tpu.memory_space<vmem>>, vector<1x16x1024xf32>
    %20 = vector.shape_cast %19 : vector<1x16x1024xf32> to vector<16x1024xf32>
    %21 = vector.broadcast %14 : vector<16x1xf32> to vector<16x1024xf32>
    %22 = arith.mulf %21, %18 : vector<16x1024xf32>
    %23 = vector.broadcast %16 : vector<16x1xf32> to vector<16x1024xf32>
    %24 = arith.mulf %23, %20 : vector<16x1024xf32>
    %25 = arith.subf %22, %24 : vector<16x1024xf32>
    %26 = arith.addf %12, %25 : vector<16x1024xf32>
    %c0_24 = arith.constant 0 : index
    %c4 = arith.constant 4 : index
    %c0_25 = arith.constant 0 : index
    %c0_26 = arith.constant 0 : index
    %27 = vector.load %arg2[%c0_24, %c4, %c0_25, %c0_26] : memref<1x8x16x1xf32, #tpu.memory_space<vmem>>, vector<1x1x16x1xf32>
    %28 = vector.shape_cast %27 : vector<1x1x16x1xf32> to vector<16x1xf32>
    %c0_27 = arith.constant 0 : index
    %c5 = arith.constant 5 : index
    %c0_28 = arith.constant 0 : index
    %c0_29 = arith.constant 0 : index
    %29 = vector.load %arg2[%c0_27, %c5, %c0_28, %c0_29] : memref<1x8x16x1xf32, #tpu.memory_space<vmem>>, vector<1x1x16x1xf32>
    %30 = vector.shape_cast %29 : vector<1x1x16x1xf32> to vector<16x1xf32>
    %c4_30 = arith.constant 4 : index
    %c0_31 = arith.constant 0 : index
    %c0_32 = arith.constant 0 : index
    %31 = vector.load %arg3[%c4_30, %c0_31, %c0_32] : memref<8x16x1024xf32, #tpu.memory_space<vmem>>, vector<1x16x1024xf32>
    %32 = vector.shape_cast %31 : vector<1x16x1024xf32> to vector<16x1024xf32>
    %c5_33 = arith.constant 5 : index
    %c0_34 = arith.constant 0 : index
    %c0_35 = arith.constant 0 : index
    %33 = vector.load %arg3[%c5_33, %c0_34, %c0_35] : memref<8x16x1024xf32, #tpu.memory_space<vmem>>, vector<1x16x1024xf32>
    %34 = vector.shape_cast %33 : vector<1x16x1024xf32> to vector<16x1024xf32>
    %35 = vector.broadcast %28 : vector<16x1xf32> to vector<16x1024xf32>
    %36 = arith.mulf %35, %32 : vector<16x1024xf32>
    %37 = vector.broadcast %30 : vector<16x1xf32> to vector<16x1024xf32>
    %38 = arith.mulf %37, %34 : vector<16x1024xf32>
    %39 = arith.subf %36, %38 : vector<16x1024xf32>
    %40 = arith.addf %26, %39 : vector<16x1024xf32>
    %c0_36 = arith.constant 0 : index
    %c6 = arith.constant 6 : index
    %c0_37 = arith.constant 0 : index
    %c0_38 = arith.constant 0 : index
    %41 = vector.load %arg2[%c0_36, %c6, %c0_37, %c0_38] : memref<1x8x16x1xf32, #tpu.memory_space<vmem>>, vector<1x1x16x1xf32>
    %42 = vector.shape_cast %41 : vector<1x1x16x1xf32> to vector<16x1xf32>
    %c0_39 = arith.constant 0 : index
    %c7 = arith.constant 7 : index
    %c0_40 = arith.constant 0 : index
    %c0_41 = arith.constant 0 : index
    %43 = vector.load %arg2[%c0_39, %c7, %c0_40, %c0_41] : memref<1x8x16x1xf32, #tpu.memory_space<vmem>>, vector<1x1x16x1xf32>
    %44 = vector.shape_cast %43 : vector<1x1x16x1xf32> to vector<16x1xf32>
    %c6_42 = arith.constant 6 : index
    %c0_43 = arith.constant 0 : index
    %c0_44 = arith.constant 0 : index
    %45 = vector.load %arg3[%c6_42, %c0_43, %c0_44] : memref<8x16x1024xf32, #tpu.memory_space<vmem>>, vector<1x16x1024xf32>
    %46 = vector.shape_cast %45 : vector<1x16x1024xf32> to vector<16x1024xf32>
    %c7_45 = arith.constant 7 : index
    %c0_46 = arith.constant 0 : index
    %c0_47 = arith.constant 0 : index
    %47 = vector.load %arg3[%c7_45, %c0_46, %c0_47] : memref<8x16x1024xf32, #tpu.memory_space<vmem>>, vector<1x16x1024xf32>
    %48 = vector.shape_cast %47 : vector<1x16x1024xf32> to vector<16x1024xf32>
    %49 = vector.broadcast %42 : vector<16x1xf32> to vector<16x1024xf32>
    %50 = arith.mulf %49, %46 : vector<16x1024xf32>
    %51 = vector.broadcast %44 : vector<16x1xf32> to vector<16x1024xf32>
    %52 = arith.mulf %51, %48 : vector<16x1024xf32>
    %53 = arith.subf %50, %52 : vector<16x1024xf32>
    %54 = arith.addf %40, %53 : vector<16x1024xf32>
    %c0_48 = arith.constant 0 : index
    %c0_49 = arith.constant 0 : index
    %55 = vector.load %arg4[%c0_48, %c0_49] : memref<16x1024xf32, #tpu.memory_space<vmem>>, vector<16x1024xf32>
    tpu.vector_store %arg4[%c0_48, %c0_49], %54 {strides = array<i32>} : memref<16x1024xf32, #tpu.memory_space<vmem>>, vector<16x1024xf32>,
    return
  }
  func.func @transform_0(%arg0: i32, %arg1: i32) -> (i32, i32, i32, i32) {
    %c0_i32 = arith.constant 0 : i32
    %c0_i32_0 = arith.constant 0 : i32
    %c0_i32_1 = arith.constant 0 : i32
    return %arg1, %c0_i32, %arg0, %c0_i32_0 : i32, i32, i32, i32
  }
  func.func @transform_1(%arg0: i32, %arg1: i32) -> (i32, i32, i32) {
    %c0_i32 = arith.constant 0 : i32
    %c0_i32_0 = arith.constant 0 : i32
    %c0_i32_1 = arith.constant 0 : i32
    return %c0_i32, %arg0, %c0_i32_0 : i32, i32, i32
  }
  func.func @transform_2(%arg0: i32, %arg1: i32) -> (i32, i32) {
    %c0_i32 = arith.constant 0 : i32
    return %arg0, %arg1 : i32, i32
  }
}

</mosaic_0001>

<llo_original>
// kernel: tpu_custom_call.1
$region0: #{tpu_custom_call.1}
  #allocation0 [shape = 'u32[]', space=smem, size = 0x4, offset = 0x4, fixed_abs, tag = 'smem constant byte address 0x4 - core index']
  #allocation1 [shape = 'u32[144,128]{1,0:T(1,128)}', space=vmem, size = 0x12000, scoped, tag = 'internal scratch']
  #allocation7 [shape = 's32[]', space=sflag, size = 0x4, offset = 0, fixed_abs, tag = 'sflag constant byte address 0x0 - dummy sync flag']
  %s0 = inlined_call_operand.vmem [shape: f32[1,8,32,1], index: 0, kind: input, shape index: {}]
  %s1 = inlined_call_operand.hbm [shape: f32[8,32,1024], index: 1, kind: input, shape index: {}]
  %s2 = inlined_call_operand.hbm [shape: f32[32,1024], index: 2, kind: output, shape index: {}]
  %s3 = sld [smem:[#allocation0]]
  $region83: #{tpu_custom_call.1} parent=0
    _
  %s5 = ssub.s32 1, %s3
  %s6 = scalar_select 0, %s5, %s3
  $region1: #{tpu_custom_call.1} parent=0
    #allocation2 [shape = 'u8[131072]{0}', space=vmem, size = 0x20000, scoped, tag = 'input window, operand 0']
    #allocation3 [shape = 'u8[1048576]{0}', space=vmem, size = 0x100000, scoped, tag = 'input window, operand 1']
    #allocation4 [shape = 's32[2]{0}', space=sflag, size = 0x8, scoped, tag = 'scoped memory for tpu_custom_call.1']
    #allocation5 [shape = 's32[2]{0}', space=sflag, size = 0x8, scoped, tag = 'scoped memory for tpu_custom_call.1']
    #allocation6 [shape = 'u8[131072]{0}', space=vmem, size = 0x20000, scoped, tag = 'output window, operand 0']
    %7 = vsyncpa [#allocation4], 0
    %s8 = scalar_lea.sflag [#allocation4], 1
    %9 = vsyncpa %s8, 0
    %10 = vsyncpa [#allocation5], 0
    %s11 = scalar_lea.sflag [#allocation5], 1
    %12 = vsyncpa %s11, 0
    loop: start=0, step=1, limit=4
    $region2: #{tpu_custom_call.1} parent=1 // loop_pre_header
      _
    $region3: #{tpu_custom_call.1} parent=1 // loop_header
      %s14 = sphi 0, %s18
      %p15 = scmp.ge.s32.totalorder %s14, 4
      %s21 = sphi 0, %s33
      %s22 = sphi 0, %s29
      %s23 = sphi 0, %s21
      %s24 = sphi 0, %s22
      %s25 = sphi 0, %s23
      %s26 = sphi 0, %s24
      %s38 = sphi 0, %s40
      %s41 = sphi 0, %s38
      %s42 = sphi 0, %s41
      %s58 = sphi 0, %s42
      %s64 = sphi 0, %s66
      %s67 = sphi 0, %s64
      %s68 = sphi 0, %s67
      %s84 = sphi 0, %s68
      %s92 = sphi 0, %s94
      %s95 = sphi 0, %s92
      %s96 = sphi 0, %s95
      %s112 = sphi 0, %s96
    $region4: #{tpu_custom_call.1} parent=1 // loop_header_branch
      %17 = sbr.rel (%p15) target = $region8
    $region5: #{tpu_custom_call.1} parent=1 // loop_body
      %s19 = ssub.s32 %s14, 1
      %s20 = ssub.s32 %s14, 2
      %s27 = sadd.s32 1, %s22
      %p28 = scmp.ge.s32.totalorder %s27, 1
      %s29 = scalar_select %p28, 0, %s27
      %s30 = sadd.s32 1, %s21
      %s31 = scalar_select %p28, %s30, %s21
      %p32 = scmp.ge.s32.totalorder %s31, 2
      %s33 = scalar_select %p32, 0, %s31
      %s34 = ssub.s32 %s22, %s29
      %s35 = ssub.s32 %s21, %s33
      %s36 = sor.u32 %s34, %s35
      %p37 = scmp.eq.s32.totalorder %s36, 0
      %s39 = sadd.s32 %s38, 1
      %s40 = scalar_select %p37, %s38, %s39
      %p43 = pneg %p37
      %p44 = scmp.eq.s32.totalorder %s14, 1
      %p45 = por %p43, %p44
      %p46 = scmp.ne.s32.totalorder %s38, %s41
      %p47 = scmp.eq.s32.totalorder %s14, 0
      %p48 = por %p46, %p47
      %p49 = scmp.ne.s32.totalorder %s38, %s41
      %p50 = scmp.eq.s32.totalorder %s19, 1
      %p51 = por %p49, %p50
      %p52 = scmp.ne.s32.totalorder %s41, %s42
      %p53 = scmp.eq.s32.totalorder %s19, 0
      %p54 = por %p52, %p53
      %p55 = scmp.ne.s32.totalorder %s41, %s42
      %p56 = scmp.eq.s32.totalorder %s20, 1
      %p57 = por %p55, %p56
      %p59 = scmp.ne.s32.totalorder %s42, %s58
      %p60 = scmp.eq.s32.totalorder %s20, 0
      %p61 = por %p59, %p60
      %s62 = ssub.s32 %s21, %s33
      %p63 = scmp.eq.s32.totalorder %s62, 0
      %s65 = sadd.s32 %s64, 1
      %s66 = scalar_select %p63, %s64, %s65
      %p69 = pneg %p63
      %p70 = scmp.eq.s32.totalorder %s14, 1
      %p71 = por %p69, %p70
      %p72 = scmp.ne.s32.totalorder %s64, %s67
      %p73 = scmp.eq.s32.totalorder %s14, 0
      %p74 = por %p72, %p73
      %p75 = scmp.ne.s32.totalorder %s64, %s67
      %p76 = scmp.eq.s32.totalorder %s19, 1
      %p77 = por %p75, %p76
      %p78 = scmp.ne.s32.totalorder %s67, %s68
      %p79 = scmp.eq.s32.totalorder %s19, 0
      %p80 = por %p78, %p79
      %p81 = scmp.ne.s32.totalorder %s67, %s68
      %p82 = scmp.eq.s32.totalorder %s20, 1
      %p83 = por %p81, %p82
      %p85 = scmp.ne.s32.totalorder %s68, %s84
      %p86 = scmp.eq.s32.totalorder %s20, 0
      %p87 = por %p85, %p86
      %s88 = ssub.s32 %s21, %s33
      %s89 = ssub.s32 %s22, %s29
      %s90 = sor.u32 %s88, %s89
      %p91 = scmp.eq.s32.totalorder %s90, 0
      %s93 = sadd.s32 %s92, 1
      %s94 = scalar_select %p91, %s92, %s93
      %p97 = pneg %p91
      %p98 = scmp.eq.s32.totalorder %s14, 1
      %p99 = por %p97, %p98
      %p100 = scmp.ne.s32.totalorder %s92, %s95
      %p101 = scmp.eq.s32.totalorder %s14, 0
      %p102 = por %p100, %p101
      %p103 = scmp.ne.s32.totalorder %s92, %s95
      %p104 = scmp.eq.s32.totalorder %s19, 1
      %p105 = por %p103, %p104
      %p106 = scmp.ne.s32.totalorder %s95, %s96
      %p107 = scmp.eq.s32.totalorder %s19, 0
      %p108 = por %p106, %p107
      %p109 = scmp.ne.s32.totalorder %s95, %s96
      %p110 = scmp.eq.s32.totalorder %s20, 1
      %p111 = por %p109, %p110
      %p113 = scmp.ne.s32.totalorder %s96, %s112
      %p114 = scmp.eq.s32.totalorder %s20, 0
      %p115 = por %p113, %p114
      %p116 = scmp.le.s32.totalorder 1, %s14
      %p117 = scmp.lt.s32.totalorder %s14, 3
      %p118 = pnand %p116, %p117
      %p119 = pneg %p118
      // Predicated region
      $region9: #{tpu_custom_call.1} parent=5 // pred_check
        _
      $region10: #{tpu_custom_call.1} parent=5 // pred_check_branch
        %121 = sbr.rel (%p118) target = $region12
      $region11: #{tpu_custom_call.1} parent=5 // pred_region
        %s122 = ssub.s32 %s14, 1
      $region12: #{tpu_custom_call.1} parent=5 // pred_fallthru
        _
      %p123 = scmp.lt.s32.totalorder %s14, 2
      // Predicated region
      $region13: #{tpu_custom_call.1} parent=5 // pred_check
        %p124 = pneg %p123
      $region14: #{tpu_custom_call.1} parent=5 // pred_check_branch
        %126 = sbr.rel (%p124) target = $region16
      $region15: #{tpu_custom_call.1} parent=5 // pred_region
        // Predicated region
        $region17: #{tpu_custom_call.1} parent=15 // pred_check
          %p127 = pneg %p48
        $region18: #{tpu_custom_call.1} parent=15 // pred_check_branch
          %129 = sbr.rel (%p127) target = $region20
        $region19: #{tpu_custom_call.1} parent=15 // pred_region
          %s130 = sand.u32 %s38, 1
          %s131 = sand.u32 %s38, 1
          %s132 = smul.addr %s131, 128
          %s133 = scalar_lea.vmem [#allocation2], %s132
          %s134 = smul.u32 2, %s21
          %s135 = smul.addr %s22, 32
          %s136 = sadd.s32 %s134, %s135
          %s137 = smul.addr %s136, 8
          %s138 = scalar_lea.vmem %s0, %s137
          // Predicated region
          $region21: #{tpu_custom_call.1} parent=19 // pred_check
            _
          $region22: #{tpu_custom_call.1} parent=19 // pred_check_branch
            %140 = sbr.rel (0) target = $region24
          $region23: #{tpu_custom_call.1} parent=19 // pred_region
            // Predicated region
            $region25: #{tpu_custom_call.1} parent=23 // pred_check
              _
            $region26: #{tpu_custom_call.1} parent=23 // pred_check_branch
              %142 = sbr.rel (0) target = $region28
            $region27: #{tpu_custom_call.1} parent=23 // pred_region
              // Predicated region
              $region40: #{tpu_custom_call.1} parent=27 // pred_check
                _
              $region41: #{tpu_custom_call.1} parent=27 // pred_check_branch
                %187 = sbr.rel (0) target = $region43
              $region42: #{tpu_custom_call.1} parent=27 // pred_region
                loop: start=0, step=1, limit=1
                $region44: #{tpu_custom_call.1} parent=42 // loop_pre_header
                  _
                $region45: #{tpu_custom_call.1} parent=42 // loop_header
                  %s189 = sphi 0, %s193
                  %p190 = scmp.ge.s32.totalorder %s189, 1
                  %s194 = sphi %s138, %s138
                  %s195 = sphi %s133, %s133
                $region46: #{tpu_custom_call.1} parent=42 // loop_header_branch
                  %192 = sbr.rel (%p190) target = $region50
                $region47: #{tpu_custom_call.1} parent=42 // loop_body
                  %v196 = vld [vmem:[%s194] sm:$0xff]
                  %197 = vst [vmem:[%s195] sm:$0xff] %v196
                  %v198 = vld [vmem:[%s194 + $0x8] sm:$0xff]
                  %199 = vst [vmem:[%s195 + $0x8] sm:$0xff] %v198
                  %v200 = vld [vmem:[%s194 + $0x20] sm:$0xff]
                  %201 = vst [vmem:[%s195 + $0x10] sm:$0xff] %v200
                  %v202 = vld [vmem:[%s194 + $0x28] sm:$0xff]
                  %203 = vst [vmem:[%s195 + $0x18] sm:$0xff] %v202
                  %v204 = vld [vmem:[%s194 + $0x40] sm:$0xff]
                  %205 = vst [vmem:[%s195 + $0x20] sm:$0xff] %v204
                  %v206 = vld [vmem:[%s194 + $0x48] sm:$0xff]
                  %207 = vst [vmem:[%s195 + $0x28] sm:$0xff] %v206
                  %v208 = vld [vmem:[%s194 + $0x60] sm:$0xff]
                  %209 = vst [vmem:[%s195 + $0x30] sm:$0xff] %v208
                  %v210 = vld [vmem:[%s194 + $0x68] sm:$0xff]
                  %211 = vst [vmem:[%s195 + $0x38] sm:$0xff] %v210
                  %v212 = vld [vmem:[%s194 + $0x80] sm:$0xff]
                  %213 = vst [vmem:[%s195 + $0x40] sm:$0xff] %v212
                  %v214 = vld [vmem:[%s194 + $0x88] sm:$0xff]
                  %215 = vst [vmem:[%s195 + $0x48] sm:$0xff] %v214
                  %v216 = vld [vmem:[%s194 + $0xa0] sm:$0xff]
                  %217 = vst [vmem:[%s195 + $0x50] sm:$0xff] %v216
                  %v218 = vld [vmem:[%s194 + $0xa8] sm:$0xff]
                  %219 = vst [vmem:[%s195 + $0x58] sm:$0xff] %v218
                  %v220 = vld [vmem:[%s194 + $0xc0] sm:$0xff]
                  %221 = vst [vmem:[%s195 + $0x60] sm:$0xff] %v220
                  %v222 = vld [vmem:[%s194 + $0xc8] sm:$0xff]
                  %223 = vst [vmem:[%s195 + $0x68] sm:$0xff] %v222
                  %v224 = vld [vmem:[%s194 + $0xe0] sm:$0xff]
                  %225 = vst [vmem:[%s195 + $0x70] sm:$0xff] %v224
                  %v226 = vld [vmem:[%s194 + $0xe8] sm:$0xff]
                  %227 = vst [vmem:[%s195 + $0x78] sm:$0xff] %v226
                $region48: #{tpu_custom_call.1} parent=42 // loop_footer
                  %s193 = sadd.s32 1, %s189
                $region49: #{tpu_custom_call.1} parent=42 // loop_footer_branch
                  %188 = sbr.rel target = $region45
                $region50: #{tpu_custom_call.1} parent=42 // loop_exit
                  _
              $region43: #{tpu_custom_call.1} parent=27 // pred_fallthru
                _
              // Predicated region
              $region51: #{tpu_custom_call.1} parent=27 // pred_check
                _
              $region52: #{tpu_custom_call.1} parent=27 // pred_check_branch
                %229 = sbr.rel target = $region54
              $region53: #{tpu_custom_call.1} parent=27 // pred_region
                _
              $region54: #{tpu_custom_call.1} parent=27 // pred_fallthru
                _
            $region28: #{tpu_custom_call.1} parent=23 // pred_fallthru
              _
            // Predicated region
            $region29: #{tpu_custom_call.1} parent=23 // pred_check
              _
            $region30: #{tpu_custom_call.1} parent=23 // pred_check_branch
              %144 = sbr.rel target = $region32
            $region31: #{tpu_custom_call.1} parent=23 // pred_region
              loop: start=0, step=1, limit=1
              $region33: #{tpu_custom_call.1} parent=31 // loop_pre_header
                _
              $region34: #{tpu_custom_call.1} parent=31 // loop_header
                %s147 = sphi 0, %s151
                %p148 = scmp.ge.s32.totalorder %s147, 1
                %s152 = sphi %s138, %s138
                %s153 = sphi %s133, %s133
              $region35: #{tpu_custom_call.1} parent=31 // loop_header_branch
                %150 = sbr.rel (%p148) target = $region39
              $region36: #{tpu_custom_call.1} parent=31 // loop_body
                %v154 = vld [vmem:[%s152] sm:$0xff]
                %155 = vst [vmem:[%s153] sm:$0xff] %v154
                %v156 = vld [vmem:[%s152 + $0x8] sm:$0xff]
                %157 = vst [vmem:[%s153 + $0x8] sm:$0xff] %v156
                %v158 = vld [vmem:[%s152 + $0x20] sm:$0xff]
                %159 = vst [vmem:[%s153 + $0x10] sm:$0xff] %v158
                %v160 = vld [vmem:[%s152 + $0x28] sm:$0xff]
                %161 = vst [vmem:[%s153 + $0x18] sm:$0xff] %v160
                %v162 = vld [vmem:[%s152 + $0x40] sm:$0xff]
                %163 = vst [vmem:[%s153 + $0x20] sm:$0xff] %v162
                %v164 = vld [vmem:[%s152 + $0x48] sm:$0xff]
                %165 = vst [vmem:[%s153 + $0x28] sm:$0xff] %v164
                %v166 = vld [vmem:[%s152 + $0x60] sm:$0xff]
                %167 = vst [vmem:[%s153 + $0x30] sm:$0xff] %v166
                %v168 = vld [vmem:[%s152 + $0x68] sm:$0xff]
                %169 = vst [vmem:[%s153 + $0x38] sm:$0xff] %v168
                %v170 = vld [vmem:[%s152 + $0x80] sm:$0xff]
                %171 = vst [vmem:[%s153 + $0x40] sm:$0xff] %v170
                %v172 = vld [vmem:[%s152 + $0x88] sm:$0xff]
                %173 = vst [vmem:[%s153 + $0x48] sm:$0xff] %v172
                %v174 = vld [vmem:[%s152 + $0xa0] sm:$0xff]
                %175 = vst [vmem:[%s153 + $0x50] sm:$0xff] %v174
                %v176 = vld [vmem:[%s152 + $0xa8] sm:$0xff]
                %177 = vst [vmem:[%s153 + $0x58] sm:$0xff] %v176
                %v178 = vld [vmem:[%s152 + $0xc0] sm:$0xff]
                %179 = vst [vmem:[%s153 + $0x60] sm:$0xff] %v178
                %v180 = vld [vmem:[%s152 + $0xc8] sm:$0xff]
                %181 = vst [vmem:[%s153 + $0x68] sm:$0xff] %v180
                %v182 = vld [vmem:[%s152 + $0xe0] sm:$0xff]
                %183 = vst [vmem:[%s153 + $0x70] sm:$0xff] %v182
                %v184 = vld [vmem:[%s152 + $0xe8] sm:$0xff]
                %185 = vst [vmem:[%s153 + $0x78] sm:$0xff] %v184
              $region37: #{tpu_custom_call.1} parent=31 // loop_footer
                %s151 = sadd.s32 1, %s147
              $region38: #{tpu_custom_call.1} parent=31 // loop_footer_branch
                %146 = sbr.rel target = $region34
              $region39: #{tpu_custom_call.1} parent=31 // loop_exit
                _
            $region32: #{tpu_custom_call.1} parent=23 // pred_fallthru
              _
          $region24: #{tpu_custom_call.1} parent=19 // pred_fallthru
            _
          %230 = vnop
        $region20: #{tpu_custom_call.1} parent=15 // pred_fallthru
          _
        // Predicated region
        $region55: #{tpu_custom_call.1} parent=15 // pred_check
          %p231 = pneg %p74
        $region56: #{tpu_custom_call.1} parent=15 // pred_check_branch
          %233 = sbr.rel (%p231) target = $region58
        $region57: #{tpu_custom_call.1} parent=15 // pred_region
          #allocation8 [shape = 'u32[6]{0}', space=smem, size = 0x18, scoped, tag = 'DMA stride descriptor']
          %s234 = sand.u32 %s64, 1
          %s235 = scalar_lea.sflag [#allocation4], %s234
          %s236 = sand.u32 %s64, 1
          %s237 = smul.addr %s236, 1024
          %s238 = scalar_lea.vmem [#allocation3], %s237
          %s239 = smul.u32 2, %s21
          %s241 = ssub.s32 16384, 16384
          %242 = vsyncadd %s235, %s241
          %s243 = smul.addr %s239, 8
          %s244 = smul.addr %s243, 128
          %s245 = scalar_lea.hbm %s1, %s244
          %s247 = sshll.u32 1, 14
          %s248 = sxor.u32 4294967295, %s247
          %s250 = sld [smem:[#allocation0]]
          %s251 = sadd.s32 2, %s250
          %s253 = sshll.u32 7, 26
          %s254 = sxor.u32 4294967295, %s253
          %s255 = sand.u32 0, %s254
          %s256 = sshll.u32 %s251, 26
          %s257 = sor.u32 %s255, %s256
          %s258 = sshll.u32 %s238, 4
          %s259 = int_to_ptr.vmem [resolvable:$true] %s258
          %265 = sst [smem:[#allocation8]] 4096
          %s266 = scalar_lea.smem [#allocation8], 1
          %267 = sst [smem:[%s266]] 2048
          %s268 = scalar_lea.smem [#allocation8], 2
          %269 = sst [smem:[%s268]] 2
          %s270 = scalar_lea.smem [#allocation8], 3
          %271 = sst [smem:[%s270]] 1024
          %s272 = scalar_lea.smem [#allocation8], 4
          %273 = sst [smem:[%s272]] 1024
          %s274 = scalar_lea.smem [#allocation8], 5
          %275 = sst [smem:[%s274]] 64
          %277 = dma.general %s245, 16384, %s259, %s235, [#allocation7], [#allocation8], %s257, 0
        $region58: #{tpu_custom_call.1} parent=15 // pred_fallthru
          _
      $region16: #{tpu_custom_call.1} parent=5 // pred_fallthru
        _
      %p278 = scmp.le.s32.totalorder 1, %s14
      %p279 = scmp.lt.s32.totalorder %s14, 3
      %p280 = pnand %p278, %p279
      %p281 = pneg %p280
      // Predicated region
      $region59: #{tpu_custom_call.1} parent=5 // pred_check
        _
      $region60: #{tpu_custom_call.1} parent=5 // pred_check_branch
        %283 = sbr.rel (%p280) target = $region62
      $region61: #{tpu_custom_call.1} parent=5 // pred_region
        %s284 = ssub.s32 %s14, 1
        %s285 = sand.u32 %s41, 1
        %s286 = sand.u32 %s41, 1
        %s287 = smul.addr %s286, 128
        %s288 = scalar_lea.vmem [#allocation2], %s287
        // Predicated region
        $region63: #{tpu_custom_call.1} parent=61 // pred_check
          %p289 = pneg %p54
        $region64: #{tpu_custom_call.1} parent=61 // pred_check_branch
          %291 = sbr.rel (%p289) target = $region66
        $region65: #{tpu_custom_call.1} parent=61 // pred_region
          _
        $region66: #{tpu_custom_call.1} parent=61 // pred_fallthru
          _
        %s292 = sand.u32 %s67, 1
        %s293 = scalar_lea.sflag [#allocation4], %s292
        %s294 = sand.u32 %s67, 1
        %s295 = smul.addr %s294, 1024
        %s296 = scalar_lea.vmem [#allocation3], %s295
        // Predicated region
        $region67: #{tpu_custom_call.1} parent=61 // pred_check
          %p297 = pneg %p80
        $region68: #{tpu_custom_call.1} parent=61 // pred_check_branch
          %299 = sbr.rel (%p297) target = $region70
        $region69: #{tpu_custom_call.1} parent=61 // pred_region
          %300 = dma.done %s293, 16384
        $region70: #{tpu_custom_call.1} parent=61 // pred_fallthru
          _
        %s301 = sand.u32 %s41, 1
        %s302 = sand.u32 %s41, 1
        %s303 = smul.addr %s302, 128
        %s304 = scalar_lea.vmem [#allocation2], %s303
        %p305 = pneg %p54
        %p306 = pneg %p51
        %s307 = sand.u32 %s67, 1
        %s308 = scalar_lea.sflag [#allocation4], %s307
        %s309 = sand.u32 %s67, 1
        %s310 = smul.addr %s309, 1024
        %s311 = scalar_lea.vmem [#allocation3], %s310
        %p312 = pneg %p80
        %p313 = pneg %p77
        %p314 = pneg %p108
        %p315 = pneg %p105
        %s316 = sand.u32 %s95, 1
        %s317 = scalar_lea.sflag [#allocation5], %s316
        %s318 = sand.u32 %s95, 1
        %s319 = smul.addr %s318, 128
        %s320 = scalar_lea.vmem [#allocation6], %s319
        %s321 = smul.u32 2, %s23
        %s322 = smul.u32 2, %s23
        %s323 = smul.u32 2, %s23
        %s324 = smul.u32 8, %s24
        %v325 = vld [vmem:[%s288] sm:$0xff]
        %v326 = vld [vmem:[%s288 + $0x8] sm:$0xff]
        %s327 = scalar_lea.vmem %s288, 16 [#allocation2]
        %v328 = vld [vmem:[%s327] sm:$0xff]
        %v329 = vld [vmem:[%s327 + $0x8] sm:$0xff]
        %v330 = vld [vmem:[%s296] sm:$0xff]
        %v331 = vld [vmem:[%s296 + $0x8] sm:$0xff]
        %v332 = vld [vmem:[%s296 + $0x10] sm:$0xff]
        %v333 = vld [vmem:[%s296 + $0x18] sm:$0xff]
        %v334 = vld [vmem:[%s296 + $0x20] sm:$0xff]
        %v335 = vld [vmem:[%s296 + $0x28] sm:$0xff]
        %v336 = vld [vmem:[%s296 + $0x30] sm:$0xff]
        %v337 = vld [vmem:[%s296 + $0x38] sm:$0xff]
        %v338 = vld [vmem:[%s296 + $0x40] sm:$0xff]
        %v339 = vld [vmem:[%s296 + $0x48] sm:$0xff]
        %v340 = vld [vmem:[%s296 + $0x50] sm:$0xff]
        %v341 = vld [vmem:[%s296 + $0x58] sm:$0xff]
        %v342 = vld [vmem:[%s296 + $0x60] sm:$0xff]
        %v343 = vld [vmem:[%s296 + $0x68] sm:$0xff]
        %v344 = vld [vmem:[%s296 + $0x70] sm:$0xff]
        %v345 = vld [vmem:[%s296 + $0x78] sm:$0xff]
        %s346 = scalar_lea.vmem %s296, 128 [#allocation3]
        %v347 = vld [vmem:[%s346] sm:$0xff]
        %v348 = vld [vmem:[%s346 + $0x8] sm:$0xff]
        %v349 = vld [vmem:[%s346 + $0x10] sm:$0xff]
        %v350 = vld [vmem:[%s346 + $0x18] sm:$0xff]
        %v351 = vld [vmem:[%s346 + $0x20] sm:$0xff]
        %v352 = vld [vmem:[%s346 + $0x28] sm:$0xff]
        %v353 = vld [vmem:[%s346 + $0x30] sm:$0xff]
        %v354 = vld [vmem:[%s346 + $0x38] sm:$0xff]
        %v355 = vld [vmem:[%s346 + $0x40] sm:$0xff]
        %v356 = vld [vmem:[%s346 + $0x48] sm:$0xff]
        %v357 = vld [vmem:[%s346 + $0x50] sm:$0xff]
        %v358 = vld [vmem:[%s346 + $0x58] sm:$0xff]
        %v359 = vld [vmem:[%s346 + $0x60] sm:$0xff]
        %v360 = vld [vmem:[%s346 + $0x68] sm:$0xff]
        %v361 = vld [vmem:[%s346 + $0x70] sm:$0xff]
        %v362 = vld [vmem:[%s346 + $0x78] sm:$0xff]
        %364 = vset.pattern.permute.xlu0 0
        %365 = vperm.xlu0 %364, %v325
        %v366 = vpop.permute.xlu0 %365
        %369 = vset.pattern.permute.xlu0 0
        %370 = vperm.xlu0 %369, %v326
        %v371 = vpop.permute.xlu0 %370
        %v373 = vmul.f32 %v366, %v330
        %v374 = vmul.f32 %v366, %v331
        %v375 = vmul.f32 %v366, %v332
        %v376 = vmul.f32 %v366, %v333
        %v377 = vmul.f32 %v366, %v334
        %v378 = vmul.f32 %v366, %v335
        %v379 = vmul.f32 %v366, %v336
        %v380 = vmul.f32 %v366, %v337
        %v381 = vmul.f32 %v371, %v338
        %v382 = vmul.f32 %v371, %v339
        %v383 = vmul.f32 %v371, %v340
        %v384 = vmul.f32 %v371, %v341
        %v385 = vmul.f32 %v371, %v342
        %v386 = vmul.f32 %v371, %v343
        %v387 = vmul.f32 %v371, %v344
        %v388 = vmul.f32 %v371, %v345
        %390 = vset.pattern.permute.xlu0 0
        %391 = vperm.xlu0 %390, %v328
        %v392 = vpop.permute.xlu0 %391
        %395 = vset.pattern.permute.xlu0 0
        %396 = vperm.xlu0 %395, %v329
        %v397 = vpop.permute.xlu0 %396
        %v399 = vmul.f32 %v392, %v347
        %v400 = vmul.f32 %v392, %v348
        %v401 = vmul.f32 %v392, %v349
        %v402 = vmul.f32 %v392, %v350
        %v403 = vmul.f32 %v392, %v351
        %v404 = vmul.f32 %v392, %v352
        %v405 = vmul.f32 %v392, %v353
        %v406 = vmul.f32 %v392, %v354
        %v407 = vmul.f32 %v397, %v355
        %v408 = vmul.f32 %v397, %v356
        %v409 = vmul.f32 %v397, %v357
        %v410 = vmul.f32 %v397, %v358
        %v411 = vmul.f32 %v397, %v359
        %v412 = vmul.f32 %v397, %v360
        %v413 = vmul.f32 %v397, %v361
        %v414 = vmul.f32 %v397, %v362
        %v415 = vsub.f32 %v373, %v399
        %v416 = vsub.f32 %v374, %v400
        %v417 = vsub.f32 %v375, %v401
        %v418 = vsub.f32 %v376, %v402
        %v419 = vsub.f32 %v377, %v403
        %v420 = vsub.f32 %v378, %v404
        %v421 = vsub.f32 %v379, %v405
        %v422 = vsub.f32 %v380, %v406
        %v423 = vsub.f32 %v381, %v407
        %v424 = vsub.f32 %v382, %v408
        %v425 = vsub.f32 %v383, %v409
        %v426 = vsub.f32 %v384, %v410
        %v427 = vsub.f32 %v385, %v411
        %v428 = vsub.f32 %v386, %v412
        %v429 = vsub.f32 %v387, %v413
        %v430 = vsub.f32 %v388, %v414
        %s431 = scalar_lea.vmem %s288, 32 [#allocation2]
        %v432 = vld [vmem:[%s431] sm:$0xff]
        %v433 = vld [vmem:[%s431 + $0x8] sm:$0xff]
        %s434 = scalar_lea.vmem %s288, 48 [#allocation2]
        %v435 = vld [vmem:[%s434] sm:$0xff]
        %v436 = vld [vmem:[%s434 + $0x8] sm:$0xff]
        %s437 = scalar_lea.vmem %s296, 256 [#allocation3]
        %v438 = vld [vmem:[%s437] sm:$0xff]
        %v439 = vld [vmem:[%s437 + $0x8] sm:$0xff]
        %v440 = vld [vmem:[%s437 + $0x10] sm:$0xff]
        %v441 = vld [vmem:[%s437 + $0x18] sm:$0xff]
        %v442 = vld [vmem:[%s437 + $0x20] sm:$0xff]
        %v443 = vld [vmem:[%s437 + $0x28] sm:$0xff]
        %v444 = vld [vmem:[%s437 + $0x30] sm:$0xff]
        %v445 = vld [vmem:[%s437 + $0x38] sm:$0xff]
        %v446 = vld [vmem:[%s437 + $0x40] sm:$0xff]
        %v447 = vld [vmem:[%s437 + $0x48] sm:$0xff]
        %v448 = vld [vmem:[%s437 + $0x50] sm:$0xff]
        %v449 = vld [vmem:[%s437 + $0x58] sm:$0xff]
        %v450 = vld [vmem:[%s437 + $0x60] sm:$0xff]
        %v451 = vld [vmem:[%s437 + $0x68] sm:$0xff]
        %v452 = vld [vmem:[%s437 + $0x70] sm:$0xff]
        %v453 = vld [vmem:[%s437 + $0x78] sm:$0xff]
        %s454 = scalar_lea.vmem %s296, 384 [#allocation3]
        %v455 = vld [vmem:[%s454] sm:$0xff]
        %v456 = vld [vmem:[%s454 + $0x8] sm:$0xff]
        %v457 = vld [vmem:[%s454 + $0x10] sm:$0xff]
        %v458 = vld [vmem:[%s454 + $0x18] sm:$0xff]
        %v459 = vld [vmem:[%s454 + $0x20] sm:$0xff]
        %v460 = vld [vmem:[%s454 + $0x28] sm:$0xff]
        %v461 = vld [vmem:[%s454 + $0x30] sm:$0xff]
        %v462 = vld [vmem:[%s454 + $0x38] sm:$0xff]
        %v463 = vld [vmem:[%s454 + $0x40] sm:$0xff]
        %v464 = vld [vmem:[%s454 + $0x48] sm:$0xff]
        %v465 = vld [vmem:[%s454 + $0x50] sm:$0xff]
        %v466 = vld [vmem:[%s454 + $0x58] sm:$0xff]
        %v467 = vld [vmem:[%s454 + $0x60] sm:$0xff]
        %v468 = vld [vmem:[%s454 + $0x68] sm:$0xff]
        %v469 = vld [vmem:[%s454 + $0x70] sm:$0xff]
        %v470 = vld [vmem:[%s454 + $0x78] sm:$0xff]
        %472 = vset.pattern.permute.xlu0 0
        %473 = vperm.xlu0 %472, %v432
        %v474 = vpop.permute.xlu0 %473
        %477 = vset.pattern.permute.xlu0 0
        %478 = vperm.xlu0 %477, %v433
        %v479 = vpop.permute.xlu0 %478
        %v481 = vmul.f32 %v474, %v438
        %v482 = vmul.f32 %v474, %v439
        %v483 = vmul.f32 %v474, %v440
        %v484 = vmul.f32 %v474, %v441
        %v485 = vmul.f32 %v474, %v442
        %v486 = vmul.f32 %v474, %v443
        %v487 = vmul.f32 %v474, %v444
        %v488 = vmul.f32 %v474, %v445
        %v489 = vmul.f32 %v479, %v446
        %v490 = vmul.f32 %v479, %v447
        %v491 = vmul.f32 %v479, %v448
        %v492 = vmul.f32 %v479, %v449
        %v493 = vmul.f32 %v479, %v450
        %v494 = vmul.f32 %v479, %v451
        %v495 = vmul.f32 %v479, %v452
        %v496 = vmul.f32 %v479, %v453
        %498 = vset.pattern.permute.xlu0 0
        %499 = vperm.xlu0 %498, %v435
        %v500 = vpop.permute.xlu0 %499
        %503 = vset.pattern.permute.xlu0 0
        %504 = vperm.xlu0 %503, %v436
        %v505 = vpop.permute.xlu0 %504
        %v507 = vmul.f32 %v500, %v455
        %v508 = vmul.f32 %v500, %v456
        %v509 = vmul.f32 %v500, %v457
        %v510 = vmul.f32 %v500, %v458
        %v511 = vmul.f32 %v500, %v459
        %v512 = vmul.f32 %v500, %v460
        %v513 = vmul.f32 %v500, %v461
        %v514 = vmul.f32 %v500, %v462
        %v515 = vmul.f32 %v505, %v463
        %v516 = vmul.f32 %v505, %v464
        %v517 = vmul.f32 %v505, %v465
        %v518 = vmul.f32 %v505, %v466
        %v519 = vmul.f32 %v505, %v467
        %v520 = vmul.f32 %v505, %v468
        %v521 = vmul.f32 %v505, %v469
        %v522 = vmul.f32 %v505, %v470
        %v523 = vsub.f32 %v481, %v507
        %v524 = vsub.f32 %v482, %v508
        %v525 = vsub.f32 %v483, %v509
        %v526 = vsub.f32 %v484, %v510
        %v527 = vsub.f32 %v485, %v511
        %v528 = vsub.f32 %v486, %v512
        %v529 = vsub.f32 %v487, %v513
        %v530 = vsub.f32 %v488, %v514
        %v531 = vsub.f32 %v489, %v515
        %v532 = vsub.f32 %v490, %v516
        %v533 = vsub.f32 %v491, %v517
        %v534 = vsub.f32 %v492, %v518
        %v535 = vsub.f32 %v493, %v519
        %v536 = vsub.f32 %v494, %v520
        %v537 = vsub.f32 %v495, %v521
        %v538 = vsub.f32 %v496, %v522
        %v539 = vadd.f32 %v415, %v523
        %v540 = vadd.f32 %v416, %v524
        %v541 = vadd.f32 %v417, %v525
        %v542 = vadd.f32 %v418, %v526
        %v543 = vadd.f32 %v419, %v527
        %v544 = vadd.f32 %v420, %v528
        %v545 = vadd.f32 %v421, %v529
        %v546 = vadd.f32 %v422, %v530
        %v547 = vadd.f32 %v423, %v531
        %v548 = vadd.f32 %v424, %v532
        %v549 = vadd.f32 %v425, %v533
        %v550 = vadd.f32 %v426, %v534
        %v551 = vadd.f32 %v427, %v535
        %v552 = vadd.f32 %v428, %v536
        %v553 = vadd.f32 %v429, %v537
        %v554 = vadd.f32 %v430, %v538
        %s555 = scalar_lea.vmem %s288, 64 [#allocation2]
        %v556 = vld [vmem:[%s555] sm:$0xff]
        %v557 = vld [vmem:[%s555 + $0x8] sm:$0xff]
        %s558 = scalar_lea.vmem %s288, 80 [#allocation2]
        %v559 = vld [vmem:[%s558] sm:$0xff]
        %v560 = vld [vmem:[%s558 + $0x8] sm:$0xff]
        %s561 = scalar_lea.vmem %s296, 512 [#allocation3]
        %v562 = vld [vmem:[%s561] sm:$0xff]
        %v563 = vld [vmem:[%s561 + $0x8] sm:$0xff]
        %v564 = vld [vmem:[%s561 + $0x10] sm:$0xff]
        %v565 = vld [vmem:[%s561 + $0x18] sm:$0xff]
        %v566 = vld [vmem:[%s561 + $0x20] sm:$0xff]
        %v567 = vld [vmem:[%s561 + $0x28] sm:$0xff]
        %v568 = vld [vmem:[%s561 + $0x30] sm:$0xff]
        %v569 = vld [vmem:[%s561 + $0x38] sm:$0xff]
        %v570 = vld [vmem:[%s561 + $0x40] sm:$0xff]
        %v571 = vld [vmem:[%s561 + $0x48] sm:$0xff]
        %v572 = vld [vmem:[%s561 + $0x50] sm:$0xff]
        %v573 = vld [vmem:[%s561 + $0x58] sm:$0xff]
        %v574 = vld [vmem:[%s561 + $0x60] sm:$0xff]
        %v575 = vld [vmem:[%s561 + $0x68] sm:$0xff]
        %v576 = vld [vmem:[%s561 + $0x70] sm:$0xff]
        %v577 = vld [vmem:[%s561 + $0x78] sm:$0xff]
        %s578 = scalar_lea.vmem %s296, 640 [#allocation3]
        %v579 = vld [vmem:[%s578] sm:$0xff]
        %v580 = vld [vmem:[%s578 + $0x8] sm:$0xff]
        %v581 = vld [vmem:[%s578 + $0x10] sm:$0xff]
        %v582 = vld [vmem:[%s578 + $0x18] sm:$0xff]
        %v583 = vld [vmem:[%s578 + $0x20] sm:$0xff]
        %v584 = vld [vmem:[%s578 + $0x28] sm:$0xff]
        %v585 = vld [vmem:[%s578 + $0x30] sm:$0xff]
        %v586 = vld [vmem:[%s578 + $0x38] sm:$0xff]
        %v587 = vld [vmem:[%s578 + $0x40] sm:$0xff]
        %v588 = vld [vmem:[%s578 + $0x48] sm:$0xff]
        %v589 = vld [vmem:[%s578 + $0x50] sm:$0xff]
        %v590 = vld [vmem:[%s578 + $0x58] sm:$0xff]
        %v591 = vld [vmem:[%s578 + $0x60] sm:$0xff]
        %v592 = vld [vmem:[%s578 + $0x68] sm:$0xff]
        %v593 = vld [vmem:[%s578 + $0x70] sm:$0xff]
        %v594 = vld [vmem:[%s578 + $0x78] sm:$0xff]
        %596 = vset.pattern.permute.xlu0 0
        %597 = vperm.xlu0 %596, %v556
        %v598 = vpop.permute.xlu0 %597
        %601 = vset.pattern.permute.xlu0 0
        %602 = vperm.xlu0 %601, %v557
        %v603 = vpop.permute.xlu0 %602
        %v605 = vmul.f32 %v598, %v562
        %v606 = vmul.f32 %v598, %v563
        %v607 = vmul.f32 %v598, %v564
        %v608 = vmul.f32 %v598, %v565
        %v609 = vmul.f32 %v598, %v566
        %v610 = vmul.f32 %v598, %v567
        %v611 = vmul.f32 %v598, %v568
        %v612 = vmul.f32 %v598, %v569
        %v613 = vmul.f32 %v603, %v570
        %v614 = vmul.f32 %v603, %v571
        %v615 = vmul.f32 %v603, %v572
        %v616 = vmul.f32 %v603, %v573
        %v617 = vmul.f32 %v603, %v574
        %v618 = vmul.f32 %v603, %v575
        %v619 = vmul.f32 %v603, %v576
        %v620 = vmul.f32 %v603, %v577
        %622 = vset.pattern.permute.xlu0 0
        %623 = vperm.xlu0 %622, %v559
        %v624 = vpop.permute.xlu0 %623
        %627 = vset.pattern.permute.xlu0 0
        %628 = vperm.xlu0 %627, %v560
        %v629 = vpop.permute.xlu0 %628
        %v631 = vmul.f32 %v624, %v579
        %v632 = vmul.f32 %v624, %v580
        %v633 = vmul.f32 %v624, %v581
        %v634 = vmul.f32 %v624, %v582
        %v635 = vmul.f32 %v624, %v583
        %v636 = vmul.f32 %v624, %v584
        %v637 = vmul.f32 %v624, %v585
        %v638 = vmul.f32 %v624, %v586
        %v639 = vmul.f32 %v629, %v587
        %v640 = vmul.f32 %v629, %v588
        %v641 = vmul.f32 %v629, %v589
        %v642 = vmul.f32 %v629, %v590
        %v643 = vmul.f32 %v629, %v591
        %v644 = vmul.f32 %v629, %v592
        %v645 = vmul.f32 %v629, %v593
        %v646 = vmul.f32 %v629, %v594
        %v647 = vsub.f32 %v605, %v631
        %v648 = vsub.f32 %v606, %v632
        %v649 = vsub.f32 %v607, %v633
        %v650 = vsub.f32 %v608, %v634
        %v651 = vsub.f32 %v609, %v635
        %v652 = vsub.f32 %v610, %v636
        %v653 = vsub.f32 %v611, %v637
        %v654 = vsub.f32 %v612, %v638
        %v655 = vsub.f32 %v613, %v639
        %v656 = vsub.f32 %v614, %v640
        %v657 = vsub.f32 %v615, %v641
        %v658 = vsub.f32 %v616, %v642
        %v659 = vsub.f32 %v617, %v643
        %v660 = vsub.f32 %v618, %v644
        %v661 = vsub.f32 %v619, %v645
        %v662 = vsub.f32 %v620, %v646
        %v663 = vadd.f32 %v539, %v647
        %v664 = vadd.f32 %v540, %v648
        %v665 = vadd.f32 %v541, %v649
        %v666 = vadd.f32 %v542, %v650
        %v667 = vadd.f32 %v543, %v651
        %v668 = vadd.f32 %v544, %v652
        %v669 = vadd.f32 %v545, %v653
        %v670 = vadd.f32 %v546, %v654
        %v671 = vadd.f32 %v547, %v655
        %v672 = vadd.f32 %v548, %v656
        %v673 = vadd.f32 %v549, %v657
        %v674 = vadd.f32 %v550, %v658
        %v675 = vadd.f32 %v551, %v659
        %v676 = vadd.f32 %v552, %v660
        %v677 = vadd.f32 %v553, %v661
        %v678 = vadd.f32 %v554, %v662
        %s679 = scalar_lea.vmem %s288, 96 [#allocation2]
        %v680 = vld [vmem:[%s679] sm:$0xff]
        %v681 = vld [vmem:[%s679 + $0x8] sm:$0xff]
        %s682 = scalar_lea.vmem %s288, 112 [#allocation2]
        %v683 = vld [vmem:[%s682] sm:$0xff]
        %v684 = vld [vmem:[%s682 + $0x8] sm:$0xff]
        %s685 = scalar_lea.vmem %s296, 768 [#allocation3]
        %v686 = vld [vmem:[%s685] sm:$0xff]
        %v687 = vld [vmem:[%s685 + $0x8] sm:$0xff]
        %v688 = vld [vmem:[%s685 + $0x10] sm:$0xff]
        %v689 = vld [vmem:[%s685 + $0x18] sm:$0xff]
        %v690 = vld [vmem:[%s685 + $0x20] sm:$0xff]
        %v691 = vld [vmem:[%s685 + $0x28] sm:$0xff]
        %v692 = vld [vmem:[%s685 + $0x30] sm:$0xff]
        %v693 = vld [vmem:[%s685 + $0x38] sm:$0xff]
        %v694 = vld [vmem:[%s685 + $0x40] sm:$0xff]
        %v695 = vld [vmem:[%s685 + $0x48] sm:$0xff]
        %v696 = vld [vmem:[%s685 + $0x50] sm:$0xff]
        %v697 = vld [vmem:[%s685 + $0x58] sm:$0xff]
        %v698 = vld [vmem:[%s685 + $0x60] sm:$0xff]
        %v699 = vld [vmem:[%s685 + $0x68] sm:$0xff]
        %v700 = vld [vmem:[%s685 + $0x70] sm:$0xff]
        %v701 = vld [vmem:[%s685 + $0x78] sm:$0xff]
        %s702 = scalar_lea.vmem %s296, 896 [#allocation3]
        %v703 = vld [vmem:[%s702] sm:$0xff]
        %v704 = vld [vmem:[%s702 + $0x8] sm:$0xff]
        %v705 = vld [vmem:[%s702 + $0x10] sm:$0xff]
        %v706 = vld [vmem:[%s702 + $0x18] sm:$0xff]
        %v707 = vld [vmem:[%s702 + $0x20] sm:$0xff]
        %v708 = vld [vmem:[%s702 + $0x28] sm:$0xff]
        %v709 = vld [vmem:[%s702 + $0x30] sm:$0xff]
        %v710 = vld [vmem:[%s702 + $0x38] sm:$0xff]
        %v711 = vld [vmem:[%s702 + $0x40] sm:$0xff]
        %v712 = vld [vmem:[%s702 + $0x48] sm:$0xff]
        %v713 = vld [vmem:[%s702 + $0x50] sm:$0xff]
        %v714 = vld [vmem:[%s702 + $0x58] sm:$0xff]
        %v715 = vld [vmem:[%s702 + $0x60] sm:$0xff]
        %v716 = vld [vmem:[%s702 + $0x68] sm:$0xff]
        %v717 = vld [vmem:[%s702 + $0x70] sm:$0xff]
        %v718 = vld [vmem:[%s702 + $0x78] sm:$0xff]
        %720 = vset.pattern.permute.xlu0 0
        %721 = vperm.xlu0 %720, %v680
        %v722 = vpop.permute.xlu0 %721
        %725 = vset.pattern.permute.xlu0 0
        %726 = vperm.xlu0 %725, %v681
        %v727 = vpop.permute.xlu0 %726
        %v729 = vmul.f32 %v722, %v686
        %v730 = vmul.f32 %v722, %v687
        %v731 = vmul.f32 %v722, %v688
        %v732 = vmul.f32 %v722, %v689
        %v733 = vmul.f32 %v722, %v690
        %v734 = vmul.f32 %v722, %v691
        %v735 = vmul.f32 %v722, %v692
        %v736 = vmul.f32 %v722, %v693
        %v737 = vmul.f32 %v727, %v694
        %v738 = vmul.f32 %v727, %v695
        %v739 = vmul.f32 %v727, %v696
        %v740 = vmul.f32 %v727, %v697
        %v741 = vmul.f32 %v727, %v698
        %v742 = vmul.f32 %v727, %v699
        %v743 = vmul.f32 %v727, %v700
        %v744 = vmul.f32 %v727, %v701
        %746 = vset.pattern.permute.xlu0 0
        %747 = vperm.xlu0 %746, %v683
        %v748 = vpop.permute.xlu0 %747
        %751 = vset.pattern.permute.xlu0 0
        %752 = vperm.xlu0 %751, %v684
        %v753 = vpop.permute.xlu0 %752
        %v755 = vmul.f32 %v748, %v703
        %v756 = vmul.f32 %v748, %v704
        %v757 = vmul.f32 %v748, %v705
        %v758 = vmul.f32 %v748, %v706
        %v759 = vmul.f32 %v748, %v707
        %v760 = vmul.f32 %v748, %v708
        %v761 = vmul.f32 %v748, %v709
        %v762 = vmul.f32 %v748, %v710
        %v763 = vmul.f32 %v753, %v711
        %v764 = vmul.f32 %v753, %v712
        %v765 = vmul.f32 %v753, %v713
        %v766 = vmul.f32 %v753, %v714
        %v767 = vmul.f32 %v753, %v715
        %v768 = vmul.f32 %v753, %v716
        %v769 = vmul.f32 %v753, %v717
        %v770 = vmul.f32 %v753, %v718
        %v771 = vsub.f32 %v729, %v755
        %v772 = vsub.f32 %v730, %v756
        %v773 = vsub.f32 %v731, %v757
        %v774 = vsub.f32 %v732, %v758
        %v775 = vsub.f32 %v733, %v759
        %v776 = vsub.f32 %v734, %v760
        %v777 = vsub.f32 %v735, %v761
        %v778 = vsub.f32 %v736, %v762
        %v779 = vsub.f32 %v737, %v763
        %v780 = vsub.f32 %v738, %v764
        %v781 = vsub.f32 %v739, %v765
        %v782 = vsub.f32 %v740, %v766
        %v783 = vsub.f32 %v741, %v767
        %v784 = vsub.f32 %v742, %v768
        %v785 = vsub.f32 %v743, %v769
        %v786 = vsub.f32 %v744, %v770
        %v787 = vadd.f32 %v663, %v771
        %v788 = vadd.f32 %v664, %v772
        %v789 = vadd.f32 %v665, %v773
        %v790 = vadd.f32 %v666, %v774
        %v791 = vadd.f32 %v667, %v775
        %v792 = vadd.f32 %v668, %v776
        %v793 = vadd.f32 %v669, %v777
        %v794 = vadd.f32 %v670, %v778
        %v795 = vadd.f32 %v671, %v779
        %v796 = vadd.f32 %v672, %v780
        %v797 = vadd.f32 %v673, %v781
        %v798 = vadd.f32 %v674, %v782
        %v799 = vadd.f32 %v675, %v783
        %v800 = vadd.f32 %v676, %v784
        %v801 = vadd.f32 %v677, %v785
        %v802 = vadd.f32 %v678, %v786
        %803 = vst [vmem:[%s320] sm:$0xff] %v787
        %804 = vst [vmem:[%s320 + $0x8] sm:$0xff] %v788
        %805 = vst [vmem:[%s320 + $0x10] sm:$0xff] %v789
        %806 = vst [vmem:[%s320 + $0x18] sm:$0xff] %v790
        %807 = vst [vmem:[%s320 + $0x20] sm:$0xff] %v791
        %808 = vst [vmem:[%s320 + $0x28] sm:$0xff] %v792
        %809 = vst [vmem:[%s320 + $0x30] sm:$0xff] %v793
        %810 = vst [vmem:[%s320 + $0x38] sm:$0xff] %v794
        %811 = vst [vmem:[%s320 + $0x40] sm:$0xff] %v795
        %812 = vst [vmem:[%s320 + $0x48] sm:$0xff] %v796
        %813 = vst [vmem:[%s320 + $0x50] sm:$0xff] %v797
        %814 = vst [vmem:[%s320 + $0x58] sm:$0xff] %v798
        %815 = vst [vmem:[%s320 + $0x60] sm:$0xff] %v799
        %816 = vst [vmem:[%s320 + $0x68] sm:$0xff] %v800
        %817 = vst [vmem:[%s320 + $0x70] sm:$0xff] %v801
        %818 = vst [vmem:[%s320 + $0x78] sm:$0xff] %v802
        %s819 = sand.u32 %s95, 1
        %s820 = scalar_lea.sflag [#allocation5], %s819
        %s821 = sand.u32 %s95, 1
        %s822 = smul.addr %s821, 128
        %s823 = scalar_lea.vmem [#allocation6], %s822
        // Predicated region
        $region71: #{tpu_custom_call.1} parent=61 // pred_check
          %p824 = pneg %p105
        $region72: #{tpu_custom_call.1} parent=61 // pred_check_branch
          %826 = sbr.rel (%p824) target = $region74
        $region73: #{tpu_custom_call.1} parent=61 // pred_region
          %s827 = smul.u32 2, %s23
          %s828 = smul.u32 8, %s24
          %s830 = ssub.s32 2048, 2048
          %831 = vsyncadd %s820, %s830
          %s832 = smul.addr %s827, 8
          %s833 = sadd.s32 %s828, %s832
          %s834 = smul.addr %s833, 128
          %s835 = scalar_lea.hbm %s2, %s834
          %s836 = sshll.u32 %s823, 4
          %s837 = int_to_ptr.vmem [resolvable:$true] %s836
          %842 = dma.vmem_to_hbm [thread:$0]  %s837, 2048, %s835, %s820, 1024, 1024, 64
        $region74: #{tpu_custom_call.1} parent=61 // pred_fallthru
          _
      $region62: #{tpu_custom_call.1} parent=5 // pred_fallthru
        _
      %p843 = scmp.le.s32.totalorder 2, %s14
      // Predicated region
      $region75: #{tpu_custom_call.1} parent=5 // pred_check
        %p844 = pneg %p843
      $region76: #{tpu_custom_call.1} parent=5 // pred_check_branch
        %846 = sbr.rel (%p844) target = $region78
      $region77: #{tpu_custom_call.1} parent=5 // pred_region
        %s847 = ssub.s32 %s14, 2
        // Predicated region
        $region79: #{tpu_custom_call.1} parent=77 // pred_check
          %p848 = pneg %p111
        $region80: #{tpu_custom_call.1} parent=77 // pred_check_branch
          %850 = sbr.rel (%p848) target = $region82
        $region81: #{tpu_custom_call.1} parent=77 // pred_region
          %s851 = sand.u32 %s96, 1
          %s852 = scalar_lea.sflag [#allocation5], %s851
          %s853 = sand.u32 %s96, 1
          %s854 = smul.addr %s853, 128
          %s855 = scalar_lea.vmem [#allocation6], %s854
          %856 = dma.done %s852, 2048
        $region82: #{tpu_custom_call.1} parent=77 // pred_fallthru
          _
      $region78: #{tpu_custom_call.1} parent=5 // pred_fallthru
        _
    $region6: #{tpu_custom_call.1} parent=1 // loop_footer
      %s18 = sadd.s32 1, %s14
    $region7: #{tpu_custom_call.1} parent=1 // loop_footer_branch
      %13 = sbr.rel target = $region3
    $region8: #{tpu_custom_call.1} parent=1 // loop_exit
      _
    %857 = vsyncpa [#allocation4], 1
    %s858 = scalar_lea.sflag [#allocation4], 1
    %859 = vsyncpa %s858, 1
    %860 = vsyncpa [#allocation5], 1
    %s861 = scalar_lea.sflag [#allocation5], 1
    %862 = vsyncpa %s861, 1

</llo_original>
